<compile_context>
chip_gen: v6e
topology: v6e:2x2x1
jax: 0.10.0
libtpu: 0.0.40
codegen_flags: <defaults>
</compile_context>

<pallas_src>
import functools

import jax
import jax.numpy as jnp
from jax.experimental import pallas as pl
from jax.experimental.pallas import tpu as pltpu

LANE = 128  # TPU lane width; fused head matmul output is padded to this.


def dueling_dqn_kernel(x_ref, w1_ref, b1_ref, w2_ref, b2_ref, wh_ref, bh_ref,
                       q_ref, *, num_actions):
    # Weights arrive pre-cast (bf16 or f32); only the activations are cast to
    # the MXU input dtype.  All accumulation / bias / ReLU / mean math is f32.
    mxu_dtype = w1_ref.dtype
    x = x_ref[...].astype(mxu_dtype)

    # fc1 + relu
    h1 = jnp.dot(x, w1_ref[...], preferred_element_type=jnp.float32) + b1_ref[...]
    h1 = jnp.maximum(h1, 0.0).astype(mxu_dtype)

    # fc2 + relu
    h2 = jnp.dot(h1, w2_ref[...], preferred_element_type=jnp.float32) + b2_ref[...]
    h2 = jnp.maximum(h2, 0.0).astype(mxu_dtype)

    # Fused heads: one [hidden, 128] matmul.  Columns 0..A-1 = advantage,
    # column A = value, columns A+1..127 = exact zeros (by construction of
    # wh/bh), so no advantage mask is needed.
    heads = jnp.dot(h2, wh_ref[...], preferred_element_type=jnp.float32) + bh_ref[...]

    lane = jax.lax.broadcasted_iota(jnp.int32, heads.shape, dimension=1)
    value = jnp.sum(jnp.where(lane == num_actions, heads, 0.0),
                    axis=-1, keepdims=True)                          # [bm, 1]
    total = jnp.sum(heads, axis=-1, keepdims=True)                   # adv_sum + value
    adv_mean = (total - value) * (1.0 / num_actions)                 # [bm, 1]

    # Compact store: only the A real action columns leave the kernel.
    q = (value - adv_mean) + heads[:, :num_actions]                  # [bm, A]
    q_ref[...] = q.astype(q_ref.dtype)


def prepare_params(params, *, use_bf16_mxu=True):
    """One-time parameter prep: fuse value/advantage heads, pre-cast weights."""
    (w1, b1, w2, b2, wv, bv, wa, ba) = params
    hidden = w1.shape[1]
    num_actions = wa.shape[1]
    assert num_actions + 1 <= LANE, "fused head packing assumes output_dim < 128"

    wh = jnp.zeros((hidden, LANE), jnp.float32)
    wh = wh.at[:, :num_actions].set(wa).at[:, num_actions:num_actions + 1].set(wv)
    bh = jnp.zeros((1, LANE), jnp.float32)
    bh = bh.at[:, :num_actions].set(ba).at[:, num_actions:num_actions + 1].set(bv)

    mxu_dtype = jnp.bfloat16 if use_bf16_mxu else jnp.float32
    return (w1.astype(mxu_dtype), b1.astype(jnp.float32),
            w2.astype(mxu_dtype), b2.astype(jnp.float32),
            wh.astype(mxu_dtype), bh.astype(jnp.float32),
            num_actions)


def _choose_tiles(batch, block_batch):
    """Pick (bm, Bp, n_tiles): sublane-aligned tiles, >=2 tiles when possible,
    and minimal batch padding (< n_tiles * 8 junk rows)."""
    b8 = pl.cdiv(batch, 8) * 8
    target = max(8, (block_batch // 8) * 8)
    if b8 <= target:
        n = 2 if b8 >= 16 else 1       # >=2 steps lets v7x split batch over 2 TCs
    else:
        n = max(2, pl.cdiv(b8, target))
    bm = pl.cdiv(b8, n * 8) * 8
    return bm, n * bm, n


def dueling_dqn_forward(x, prepared, *, block_batch=2048):
    (w1, b1, w2, b2, wh, bh, num_actions) = prepared
    B, input_dim = x.shape

    bm, Bp, n_tiles = _choose_tiles(B, block_batch)
    x_p = x if Bp == B else jnp.pad(x, ((0, Bp - B), (0, 0)))

    const2d = lambda shp: pl.BlockSpec(shp, lambda i: (0, 0))  # VMEM-resident weights

    out = pl.pallas_call(
        functools.partial(dueling_dqn_kernel, num_actions=num_actions),
        out_shape=jax.ShapeDtypeStruct((Bp, num_actions), jnp.float32),
        grid=(n_tiles,),
        in_specs=[
            pl.BlockSpec((bm, input_dim), lambda i: (i, 0)),   # x: tiled over batch
            const2d(w1.shape), const2d(b1.shape),
            const2d(w2.shape), const2d(b2.shape),
            const2d(wh.shape), const2d(bh.shape),
        ],
        out_specs=pl.BlockSpec((bm, num_actions), lambda i: (i, 0)),  # compact q
        compiler_params=pltpu.CompilerParams(
            dimension_semantics=("parallel",)),                # batch tiles independent
    )(x_p, w1, b1, w2, b2, wh, bh)

    return out if Bp == B else out[:B]


def init_params(key, input_dim, output_dim, hidden=128):
    # Deterministic init mimicking PyTorch nn.Linear's U(-1/sqrt(fan_in), +).
    ks = jax.random.split(key, 8)

    def lin(kw, kb, fan_in, fan_out):
        bound = 1.0 / jnp.sqrt(jnp.float32(fan_in))
        w = jax.random.uniform(kw, (fan_in, fan_out), jnp.float32, -bound, bound)
        b = jax.random.uniform(kb, (1, fan_out), jnp.float32, -bound, bound)
        return w, b

    w1, b1 = lin(ks[0], ks[1], input_dim, hidden)
    w2, b2 = lin(ks[2], ks[3], hidden, hidden)
    wv, bv = lin(ks[4], ks[5], hidden, 1)
    wa, ba = lin(ks[6], ks[7], hidden, output_dim)
    return (w1, b1, w2, b2, wv, bv, wa, ba)


def reference_forward(x, params):
    (w1, b1, w2, b2, wv, bv, wa, ba) = params
    h1 = jnp.maximum(x @ w1 + b1, 0.0)
    h2 = jnp.maximum(h1 @ w2 + b2, 0.0)
    value = h2 @ wv + bv
    adv = h2 @ wa + ba
    return value + (adv - adv.mean(axis=1, keepdims=True))


if __name__ == "__main__":
    key = jax.random.PRNGKey(0)
    k_x, k_p, k_x2 = jax.random.split(key, 3)

    batch = 2
    input_dim = 32
    output_dim = 8

    x = jax.random.normal(k_x, (batch, input_dim), jnp.float32)
    params = init_params(k_p, input_dim, output_dim)
    q_ref = reference_forward(x, params)

    # f32 MXU path (exact-semantics check; jnp.dot default precision matches
    # the XLA reference's default — set precision=HIGHEST if bit-exactness
    # versus a true f32 reference is required).
    prep_f32 = prepare_params(params, use_bf16_mxu=False)
    q = jax.block_until_ready(dueling_dqn_forward(x, prep_f32))
    assert q.shape == (batch, output_dim)
    assert jnp.allclose(q, q_ref, atol=1e-4, rtol=1e-4), "f32 mismatch vs reference"

    # Default fast path: bf16 MXU inputs, f32 accumulation / elementwise.
    prep_bf16 = prepare_params(params)
    q_bf16 = jax.block_until_ready(dueling_dqn_forward(x, prep_bf16))
    assert q_bf16.shape == (batch, output_dim)
    assert jnp.allclose(q_bf16, q_ref, atol=1e-1, rtol=1e-1), "bf16 mismatch vs reference"

    # Multi-tile + ragged-batch path (exercises >=2 grid steps and padding).
    batch2 = 300
    x2 = jax.random.normal(k_x2, (batch2, input_dim), jnp.float32)
    q2_ref = reference_forward(x2, params)
    q2 = jax.block_until_ready(dueling_dqn_forward(x2, prep_f32))
    assert q2.shape == (batch2, output_dim)
    assert jnp.allclose(q2, q2_ref, atol=1e-3, rtol=1e-3), "multi-tile mismatch"

    print("KERNEL_OK")
</pallas_src>

<mosaic_0001>
module attributes {stable_mosaic.version = 11 : i64} {
  func.func @dueling_dqn_kernel(%arg0: i32, %arg1: memref<8x32xf32, #tpu.memory_space<vmem>>, %arg2: memref<32x128xf32, #tpu.memory_space<vmem>>, %arg3: memref<1x128xf32, #tpu.memory_space<vmem>>, %arg4: memref<128x128xf32, #tpu.memory_space<vmem>>, %arg5: memref<1x128xf32, #tpu.memory_space<vmem>>, %arg6: memref<128x128xf32, #tpu.memory_space<vmem>>, %arg7: memref<1x128xf32, #tpu.memory_space<vmem>>, %arg8: memref<8x8xf32, #tpu.memory_space<vmem>>) attributes {dimension_semantics = [#tpu.dimension_semantics<parallel>], iteration_bounds = array<i64: 1>, scalar_prefetch = 0 : i64, scratch_operands = 0 : i64, tpu.core_type = #tpu.core_type<tc>, window_params = [{transform_indices = @transform_0, window_bounds = array<i64: 8, 32>}, {pipeline_mode = #tpu.pipeline_mode<synchronous>, transform_indices = @transform_1, window_bounds = array<i64: 32, 128>}, {pipeline_mode = #tpu.pipeline_mode<synchronous>, transform_indices = @transform_2, window_bounds = array<i64: 1, 128>}, {pipeline_mode = #tpu.pipeline_mode<synchronous>, transform_indices = @transform_3, window_bounds = array<i64: 128, 128>}, {pipeline_mode = #tpu.pipeline_mode<synchronous>, transform_indices = @transform_4, window_bounds = array<i64: 1, 128>}, {pipeline_mode = #tpu.pipeline_mode<synchronous>, transform_indices = @transform_5, window_bounds = array<i64: 128, 128>}, {pipeline_mode = #tpu.pipeline_mode<synchronous>, transform_indices = @transform_6, window_bounds = array<i64: 1, 128>}, {transform_indices = @transform_7, window_bounds = array<i64: 8, 8>}]} {
    %c0 = arith.constant 0 : index
    %c0_0 = arith.constant 0 : index
    %0 = vector.load %arg1[%c0, %c0_0] : memref<8x32xf32, #tpu.memory_space<vmem>>, vector<8x32xf32>
    %c0_1 = arith.constant 0 : index
    %c0_2 = arith.constant 0 : index
    %1 = vector.load %arg2[%c0_1, %c0_2] : memref<32x128xf32, #tpu.memory_space<vmem>>, vector<32x128xf32>
    %cst = arith.constant dense<0.000000e+00> : vector<8x128xf32>
    %2 = tpu.matmul %0, %1, %cst {dimension_numbers = #tpu.dot_dimension_numbers<[1], [0], [0], [1], [0, 0, 1, 1], [], []>} : vector<8x32xf32>, vector<32x128xf32>, vector<8x128xf32> -> vector<8x128xf32>
    %c0_3 = arith.constant 0 : index
    %c0_4 = arith.constant 0 : index
    %3 = vector.load %arg3[%c0_3, %c0_4] : memref<1x128xf32, #tpu.memory_space<vmem>>, vector<1x128xf32>
    %4 = vector.broadcast %3 : vector<1x128xf32> to vector<8x128xf32>
    %5 = arith.addf %2, %4 : vector<8x128xf32>
    %cst_5 = arith.constant 0.000000e+00 : f32
    %6 = vector.broadcast %cst_5 : f32 to vector<8x128xf32>
    %7 = arith.maximumf %5, %6 : vector<8x128xf32>
    %c0_6 = arith.constant 0 : index
    %c0_7 = arith.constant 0 : index
    %8 = vector.load %arg4[%c0_6, %c0_7] : memref<128x128xf32, #tpu.memory_space<vmem>>, vector<128x128xf32>
    %cst_8 = arith.constant dense<0.000000e+00> : vector<8x128xf32>
    %9 = tpu.matmul %7, %8, %cst_8 {dimension_numbers = #tpu.dot_dimension_numbers<[1], [0], [0], [1], [0, 0, 1, 1], [], []>} : vector<8x128xf32>, vector<128x128xf32>, vector<8x128xf32> -> vector<8x128xf32>
    %c0_9 = arith.constant 0 : index
    %c0_10 = arith.constant 0 : index
    %10 = vector.load %arg5[%c0_9, %c0_10] : memref<1x128xf32, #tpu.memory_space<vmem>>, vector<1x128xf32>
    %11 = vector.broadcast %10 : vector<1x128xf32> to vector<8x128xf32>
    %12 = arith.addf %9, %11 : vector<8x128xf32>
    %cst_11 = arith.constant 0.000000e+00 : f32
    %13 = vector.broadcast %cst_11 : f32 to vector<8x128xf32>
    %14 = arith.maximumf %12, %13 : vector<8x128xf32>
    %c0_12 = arith.constant 0 : index
    %c0_13 = arith.constant 0 : index
    %15 = vector.load %arg6[%c0_12, %c0_13] : memref<128x128xf32, #tpu.memory_space<vmem>>, vector<128x128xf32>
    %cst_14 = arith.constant dense<0.000000e+00> : vector<8x128xf32>
    %16 = tpu.matmul %14, %15, %cst_14 {dimension_numbers = #tpu.dot_dimension_numbers<[1], [0], [0], [1], [0, 0, 1, 1], [], []>} : vector<8x128xf32>, vector<128x128xf32>, vector<8x128xf32> -> vector<8x128xf32>
    %c0_15 = arith.constant 0 : index
    %c0_16 = arith.constant 0 : index
    %17 = vector.load %arg7[%c0_15, %c0_16] : memref<1x128xf32, #tpu.memory_space<vmem>>, vector<1x128xf32>
    %18 = vector.broadcast %17 : vector<1x128xf32> to vector<8x128xf32>
    %19 = arith.addf %16, %18 : vector<8x128xf32>
    %20 = tpu.iota {dimensions = array<i32: 1>} : vector<8x128xi32>
    %c8_i32 = arith.constant 8 : i32
    %21 = vector.broadcast %c8_i32 : i32 to vector<8x128xi32>
    %22 = arith.cmpi eq, %20, %21 : vector<8x128xi32>
    %cst_17 = arith.constant 0.000000e+00 : f32
    %23 = vector.broadcast %cst_17 : f32 to vector<8x128xf32>
    %24 = arith.select %22, %19, %23 : vector<8x128xi1>, vector<8x128xf32>
    %cst_18 = arith.constant dense<0.000000e+00> : vector<8xf32>
    %25 = vector.multi_reduction <add>, %24, %cst_18 [1] : vector<8x128xf32> to vector<8xf32>
    %26 = vector.shape_cast %25 : vector<8xf32> to vector<8x1xf32>
    %cst_19 = arith.constant dense<0.000000e+00> : vector<8xf32>
    %27 = vector.multi_reduction <add>, %19, %cst_19 [1] : vector<8x128xf32> to vector<8xf32>
    %28 = vector.shape_cast %27 : vector<8xf32> to vector<8x1xf32>
    %29 = arith.subf %28, %26 : vector<8x1xf32>
    %cst_20 = arith.constant 1.250000e-01 : f32
    %30 = vector.broadcast %cst_20 : f32 to vector<8x1xf32>
    %31 = arith.mulf %29, %30 : vector<8x1xf32>
    %32 = arith.subf %26, %31 : vector<8x1xf32>
    %33 = vector.extract_strided_slice %19 {offsets = [0, 0], sizes = [8, 8], strides = [1, 1]} : vector<8x128xf32> to vector<8x8xf32>
    %34 = vector.broadcast %32 : vector<8x1xf32> to vector<8x8xf32>
    %35 = arith.addf %34, %33 : vector<8x8xf32>
    %c0_21 = arith.constant 0 : index
    %c0_22 = arith.constant 0 : index
    %36 = vector.load %arg8[%c0_21, %c0_22] : memref<8x8xf32, #tpu.memory_space<vmem>>, vector<8x8xf32>
    tpu.vector_store %arg8[%c0_21, %c0_22], %35 {strides = array<i32>} : memref<8x8xf32, #tpu.memory_space<vmem>>, vector<8x8xf32>,
    return
  }
  func.func @transform_0(%arg0: i32) -> (i32, i32) {
    %c0_i32 = arith.constant 0 : i32
    %c0_i32_0 = arith.constant 0 : i32
    return %arg0, %c0_i32 : i32, i32
  }
  func.func @transform_1(%arg0: i32) -> (i32, i32) {
    %c0_i32 = arith.constant 0 : i32
    %c0_i32_0 = arith.constant 0 : i32
    %c0_i32_1 = arith.constant 0 : i32
    return %c0_i32, %c0_i32_0 : i32, i32
  }
  func.func @transform_2(%arg0: i32) -> (i32, i32) {
    %c0_i32 = arith.constant 0 : i32
    %c0_i32_0 = arith.constant 0 : i32
    %c0_i32_1 = arith.constant 0 : i32
    return %c0_i32, %c0_i32_0 : i32, i32
  }
  func.func @transform_3(%arg0: i32) -> (i32, i32) {
    %c0_i32 = arith.constant 0 : i32
    %c0_i32_0 = arith.constant 0 : i32
    %c0_i32_1 = arith.constant 0 : i32
    return %c0_i32, %c0_i32_0 : i32, i32
  }
  func.func @transform_4(%arg0: i32) -> (i32, i32) {
    %c0_i32 = arith.constant 0 : i32
    %c0_i32_0 = arith.constant 0 : i32
    %c0_i32_1 = arith.constant 0 : i32
    return %c0_i32, %c0_i32_0 : i32, i32
  }
  func.func @transform_5(%arg0: i32) -> (i32, i32) {
    %c0_i32 = arith.constant 0 : i32
    %c0_i32_0 = arith.constant 0 : i32
    %c0_i32_1 = arith.constant 0 : i32
    return %c0_i32, %c0_i32_0 : i32, i32
  }
  func.func @transform_6(%arg0: i32) -> (i32, i32) {
    %c0_i32 = arith.constant 0 : i32
    %c0_i32_0 = arith.constant 0 : i32
    %c0_i32_1 = arith.constant 0 : i32
    return %c0_i32, %c0_i32_0 : i32, i32
  }
  func.func @transform_7(%arg0: i32) -> (i32, i32) {
    %c0_i32 = arith.constant 0 : i32
    %c0_i32_0 = arith.constant 0 : i32
    return %arg0, %c0_i32 : i32, i32
  }
}

</mosaic_0001>

<llo_original>
// kernel: tpu_custom_call.1
$region0: #{tpu_custom_call.1}
  #allocation0 [shape = 'u32[]', space=smem, size = 0x4, offset = 0x4, fixed_abs, tag = 'smem constant byte address 0x4 - core index']
  #allocation1 [shape = 'u32[144,128]{1,0:T(1,128)}', space=vmem, size = 0x12000, scoped, tag = 'internal scratch']
  %s0 = inlined_call_operand.hbm [shape: f32[8,32], index: 0, kind: input, shape index: {}]
  %s1 = inlined_call_operand.hbm [shape: f32[32,128], index: 1, kind: input, shape index: {}]
  %s2 = inlined_call_operand.vmem [shape: f32[1,128], index: 2, kind: input, shape index: {}]
  %s3 = inlined_call_operand.hbm [shape: f32[128,128], index: 3, kind: input, shape index: {}]
  %s4 = inlined_call_operand.vmem [shape: f32[1,128], index: 4, kind: input, shape index: {}]
  %s5 = inlined_call_operand.hbm [shape: f32[128,128], index: 5, kind: input, shape index: {}]
  %s6 = inlined_call_operand.vmem [shape: f32[1,128], index: 6, kind: input, shape index: {}]
  %s7 = inlined_call_operand.hbm [shape: f32[8,8], index: 7, kind: output, shape index: {}]
  %s8 = sld [smem:[#allocation0]]
  $region54: #{tpu_custom_call.1} parent=0
    _
  %s10 = ssub.s32 1, %s8
  %s11 = scalar_select 0, %s10, %s8
  $region1: #{tpu_custom_call.1} parent=0
    #allocation2 [shape = 'u8[4096]{0}', space=vmem, size = 0x1000, scoped, tag = 'input window, operand 0, single buffered']
    #allocation3 [shape = 's32[1]{0}', space=sflag, size = 0x4, scoped, tag = 'scoped memory for tpu_custom_call.1']
    #allocation4 [shape = 's32[1]{0}', space=sflag, size = 0x4, scoped, tag = 'scoped memory for tpu_custom_call.1']
    #allocation5 [shape = 'u8[16384]{0}', space=vmem, size = 0x4000, scoped, tag = 'input window, operand 1, single buffered']
    #allocation6 [shape = 's32[1]{0}', space=sflag, size = 0x4, scoped, tag = 'scoped memory for tpu_custom_call.1']
    #allocation7 [shape = 'u8[65536]{0}', space=vmem, size = 0x10000, scoped, tag = 'input window, operand 3, single buffered']
    #allocation8 [shape = 'u8[65536]{0}', space=vmem, size = 0x10000, scoped, tag = 'input window, operand 5, single buffered']
    #allocation9 [shape = 's32[1]{0}', space=sflag, size = 0x4, scoped, tag = 'scoped memory for tpu_custom_call.1']
    #allocation10 [shape = 'u8[4096]{0}', space=vmem, size = 0x1000, scoped, tag = 'output window, operand 0, single buffered']
    %12 = vsyncpa [#allocation3], 0
    %13 = vsyncpa [#allocation6], 0
    %14 = vsyncpa [#allocation9], 0
    %15 = vsyncpa [#allocation4], 0
    // Predicated region
    $region2: #{tpu_custom_call.1} parent=1 // pred_check
      _
    $region3: #{tpu_custom_call.1} parent=1 // pred_check_branch
      %17 = sbr.rel (0) target = $region5
    $region4: #{tpu_custom_call.1} parent=1 // pred_region
      %s19 = ssub.s32 128, 128
      %20 = vsyncadd [#allocation3], %s19
      %s22 = sshll.u32 [#allocation2], 4
      %s23 = int_to_ptr.vmem [resolvable:$true] %s22
      %25 = dma.hbm_to_vmem [thread:$0]  %s0, 128, %s23, [#allocation3]
    $region5: #{tpu_custom_call.1} parent=1 // pred_fallthru
      _
    // Predicated region
    $region6: #{tpu_custom_call.1} parent=1 // pred_check
      _
    $region7: #{tpu_custom_call.1} parent=1 // pred_check_branch
      %27 = sbr.rel (0) target = $region9
    $region8: #{tpu_custom_call.1} parent=1 // pred_region
      %s29 = ssub.s32 512, 512
      %30 = vsyncadd [#allocation6], %s29
      %s31 = sshll.u32 [#allocation5], 4
      %s32 = int_to_ptr.vmem [resolvable:$true] %s31
      %37 = dma.hbm_to_vmem [thread:$0]  %s1, 512, %s32, [#allocation6], 128, 128, 8
    $region9: #{tpu_custom_call.1} parent=1 // pred_fallthru
      _
    // Predicated region
    $region10: #{tpu_custom_call.1} parent=1 // pred_check
      _
    $region11: #{tpu_custom_call.1} parent=1 // pred_check_branch
      %39 = sbr.rel (0) target = $region13
    $region12: #{tpu_custom_call.1} parent=1 // pred_region
      _
    $region13: #{tpu_custom_call.1} parent=1 // pred_fallthru
      _
    // Predicated region
    $region14: #{tpu_custom_call.1} parent=1 // pred_check
      _
    $region15: #{tpu_custom_call.1} parent=1 // pred_check_branch
      %41 = sbr.rel (0) target = $region17
    $region16: #{tpu_custom_call.1} parent=1 // pred_region
      %s43 = ssub.s32 2048, 2048
      %44 = vsyncadd [#allocation6], %s43
      %s45 = sshll.u32 [#allocation7], 4
      %s46 = int_to_ptr.vmem [resolvable:$true] %s45
      %51 = dma.hbm_to_vmem [thread:$0]  %s3, 2048, %s46, [#allocation6], 128, 128, 8
    $region17: #{tpu_custom_call.1} parent=1 // pred_fallthru
      _
    // Predicated region
    $region18: #{tpu_custom_call.1} parent=1 // pred_check
      _
    $region19: #{tpu_custom_call.1} parent=1 // pred_check_branch
      %53 = sbr.rel (0) target = $region21
    $region20: #{tpu_custom_call.1} parent=1 // pred_region
      _
    $region21: #{tpu_custom_call.1} parent=1 // pred_fallthru
      _
    // Predicated region
    $region22: #{tpu_custom_call.1} parent=1 // pred_check
      _
    $region23: #{tpu_custom_call.1} parent=1 // pred_check_branch
      %55 = sbr.rel (0) target = $region25
    $region24: #{tpu_custom_call.1} parent=1 // pred_region
      %s57 = ssub.s32 2048, 2048
      %58 = vsyncadd [#allocation9], %s57
      %s59 = sshll.u32 [#allocation8], 4
      %s60 = int_to_ptr.vmem [resolvable:$true] %s59
      %65 = dma.hbm_to_vmem [thread:$0]  %s5, 2048, %s60, [#allocation9], 128, 128, 8
    $region25: #{tpu_custom_call.1} parent=1 // pred_fallthru
      _
    // Predicated region
    $region26: #{tpu_custom_call.1} parent=1 // pred_check
      _
    $region27: #{tpu_custom_call.1} parent=1 // pred_check_branch
      %67 = sbr.rel (0) target = $region29
    $region28: #{tpu_custom_call.1} parent=1 // pred_region
      _
    $region29: #{tpu_custom_call.1} parent=1 // pred_fallthru
      _
    // Predicated region
    $region30: #{tpu_custom_call.1} parent=1 // pred_check
      _
    $region31: #{tpu_custom_call.1} parent=1 // pred_check_branch
      %69 = sbr.rel (0) target = $region33
    $region32: #{tpu_custom_call.1} parent=1 // pred_region
      %70 = dma.done [#allocation3], 128
    $region33: #{tpu_custom_call.1} parent=1 // pred_fallthru
      _
    // Predicated region
    $region34: #{tpu_custom_call.1} parent=1 // pred_check
      _
    $region35: #{tpu_custom_call.1} parent=1 // pred_check_branch
      %72 = sbr.rel (0) target = $region37
    $region36: #{tpu_custom_call.1} parent=1 // pred_region
      %73 = dma.done [#allocation6], 512
    $region37: #{tpu_custom_call.1} parent=1 // pred_fallthru
      _
    // Predicated region
    $region38: #{tpu_custom_call.1} parent=1 // pred_check
      _
    $region39: #{tpu_custom_call.1} parent=1 // pred_check_branch
      %75 = sbr.rel (0) target = $region41
    $region40: #{tpu_custom_call.1} parent=1 // pred_region
      %76 = dma.done [#allocation6], 2048
    $region41: #{tpu_custom_call.1} parent=1 // pred_fallthru
      _
    // Predicated region
    $region42: #{tpu_custom_call.1} parent=1 // pred_check
      _
    $region43: #{tpu_custom_call.1} parent=1 // pred_check_branch
      %78 = sbr.rel (0) target = $region45
    $region44: #{tpu_custom_call.1} parent=1 // pred_region
      %79 = dma.done [#allocation9], 2048
    $region45: #{tpu_custom_call.1} parent=1 // pred_fallthru
      _
    %v80 = vld [vmem:[#allocation2] sm:$0xff]
    %v81 = vld [vmem:[#allocation5] sm:$0xff]
    %v82 = vld [vmem:[#allocation5 + $0x8] sm:$0xff]
    %v83 = vld [vmem:[#allocation5 + $0x10] sm:$0xff]
    %v84 = vld [vmem:[#allocation5 + $0x18] sm:$0xff]
    %v85 = vld [vmem:[%s2] sm:$0x1]
    %v87 = vlaneseq
    %v88 = vshrl.u32 %v87, 7
    %v89 = vsub.s32 0, %v88
    %v90 = vrot.slane %v85, %v89
    %vm92 = vcmask 261120
    %v94 = vsel %vm92, %v80, 0
    %96 = vmatprep.subr.mxu0 0.0
    %97 = vmatpush1.msra.mxu0 0.0
    %98 = vmatprep.subr.mxu0 0.0
    %99 = vmatpush1.msra.mxu0 0.0
    %100 = vmatprep.subr.mxu0 0.0
    %101 = vmatpush1.msra.mxu0 0.0
    %102 = vmatprep.subr.mxu0 0.0
    %103 = vmatpush1.msra.mxu0 0.0
    %104 = vmatprep.subr.mxu0 0.0
    %105 = vmatpush1.msra.mxu0 0.0
    %106 = vmatprep.subr.mxu0 0.0
    %107 = vmatpush1.msra.mxu0 0.0
    %108 = vmatprep.subr.mxu0 0.0
    %109 = vmatpush1.msra.mxu0 0.0
    %110 = vmatprep.subr.mxu0 0.0
    %111 = vmatpush1.msra.mxu0 0.0
    %112 = vmatprep.subr.mxu0 0.0
    %113 = vmatpush1.msra.mxu0 0.0
    %114 = vmatprep.subr.mxu0 0.0
    %115 = vmatpush1.msra.mxu0 0.0
    %116 = vmatprep.subr.mxu0 0.0
    %117 = vmatpush1.msra.mxu0 0.0
    %118 = vmatprep.subr.mxu0 0.0
    %119 = vmatpush1.msra.mxu0 0.0
    %120 = vmatprep.subr.mxu0 0.0
    %121 = vmatpush1.msra.mxu0 %v84
    %122 = vmatprep.subr.mxu0 0.0
    %123 = vmatpush1.msra.mxu0 %v83
    %124 = vmatprep.subr.mxu0 0.0
    %125 = vmatpush1.msra.mxu0 %v82
    %126 = vmatprep.subr.mxu0 0.0
    %127 = vmatpush1.msra.mxu0 %v81
    %128 = vmatprep.subr.mxu0 0.0
    %129 = vmatpush2.msra.mxu0 0.0
    %130 = vmatprep.subr.mxu0 0.0
    %131 = vmatpush2.msra.mxu0 0.0
    %132 = vmatprep.subr.mxu0 0.0
    %133 = vmatpush2.msra.mxu0 0.0
    %134 = vmatprep.subr.mxu0 0.0
    %135 = vmatpush2.msra.mxu0 0.0
    %136 = vmatprep.subr.mxu0 0.0
    %137 = vmatpush2.msra.mxu0 0.0
    %138 = vmatprep.subr.mxu0 0.0
    %139 = vmatpush2.msra.mxu0 0.0
    %140 = vmatprep.subr.mxu0 0.0
    %141 = vmatpush2.msra.mxu0 0.0
    %142 = vmatprep.subr.mxu0 0.0
    %143 = vmatpush2.msra.mxu0 0.0
    %144 = vmatprep.subr.mxu0 0.0
    %145 = vmatpush2.msra.mxu0 0.0
    %146 = vmatprep.subr.mxu0 0.0
    %147 = vmatpush2.msra.mxu0 0.0
    %148 = vmatprep.subr.mxu0 0.0
    %149 = vmatpush2.msra.mxu0 0.0
    %150 = vmatprep.subr.mxu0 0.0
    %151 = vmatpush2.msra.mxu0 0.0
    %152 = vmatprep.subr.mxu0 0.0
    %153 = vmatpush2.msra.mxu0 0.0
    %154 = vmatprep.subr.mxu0 0.0
    %155 = vmatpush2.msra.mxu0 0.0
    %156 = vmatprep.subr.mxu0 0.0
    %157 = vmatpush2.msra.mxu0 0.0
    %158 = vmatprep.subr.mxu0 0.0
    %159 = vmatpush2.msra.mxu0 0.0
    %160 = vmatprep.mubr.f32.mxu0 0.0
    %161 = vmatmul.mubr.f32.gmra.mxu0 %v94
    %v162 = vpop.f32.mrf.mxu0
    %v163 = vadd.f32 %v90, %v162
    %v164 = vpop.f32.mrf.mxu0
    %165 = vdwg.mxu0
    %v166 = vmax.f32 %v163, 0.0
    %v167 = vld [vmem:[#allocation7] sm:$0xff]
    %v168 = vld [vmem:[#allocation7 + $0x8] sm:$0xff]
    %v169 = vld [vmem:[#allocation7 + $0x10] sm:$0xff]
    %v170 = vld [vmem:[#allocation7 + $0x18] sm:$0xff]
    %v171 = vld [vmem:[#allocation7 + $0x20] sm:$0xff]
    %v172 = vld [vmem:[#allocation7 + $0x28] sm:$0xff]
    %v173 = vld [vmem:[#allocation7 + $0x30] sm:$0xff]
    %v174 = vld [vmem:[#allocation7 + $0x38] sm:$0xff]
    %v175 = vld [vmem:[#allocation7 + $0x40] sm:$0xff]
    %v176 = vld [vmem:[#allocation7 + $0x48] sm:$0xff]
    %v177 = vld [vmem:[#allocation7 + $0x50] sm:$0xff]
    %v178 = vld [vmem:[#allocation7 + $0x58] sm:$0xff]
    %v179 = vld [vmem:[#allocation7 + $0x60] sm:$0xff]
    %v180 = vld [vmem:[#allocation7 + $0x68] sm:$0xff]
    %v181 = vld [vmem:[#allocation7 + $0x70] sm:$0xff]
    %v182 = vld [vmem:[#allocation7 + $0x78] sm:$0xff]
    %v183 = vld [vmem:[%s4] sm:$0x1]
    %v185 = vlaneseq
    %v186 = vshrl.u32 %v185, 7
    %v187 = vsub.s32 0, %v186
    %v188 = vrot.slane %v183, %v187
    %190 = vmatprep.subr.mxu0 0.0
    %191 = vmatpush1.msra.mxu0 %v182
    %192 = vmatprep.subr.mxu0 0.0
    %193 = vmatpush1.msra.mxu0 %v181
    %194 = vmatprep.subr.mxu0 0.0
    %195 = vmatpush1.msra.mxu0 %v180
    %196 = vmatprep.subr.mxu0 0.0
    %197 = vmatpush1.msra.mxu0 %v179
    %198 = vmatprep.subr.mxu0 0.0
    %199 = vmatpush1.msra.mxu0 %v178
    %200 = vmatprep.subr.mxu0 0.0
    %201 = vmatpush1.msra.mxu0 %v177
    %202 = vmatprep.subr.mxu0 0.0
    %203 = vmatpush1.msra.mxu0 %v176
    %204 = vmatprep.subr.mxu0 0.0
    %205 = vmatpush1.msra.mxu0 %v175
    %206 = vmatprep.subr.mxu0 0.0
    %207 = vmatpush1.msra.mxu0 %v174
    %208 = vmatprep.subr.mxu0 0.0
    %209 = vmatpush1.msra.mxu0 %v173
    %210 = vmatprep.subr.mxu0 0.0
    %211 = vmatpush1.msra.mxu0 %v172
    %212 = vmatprep.subr.mxu0 0.0
    %213 = vmatpush1.msra.mxu0 %v171
    %214 = vmatprep.subr.mxu0 0.0
    %215 = vmatpush1.msra.mxu0 %v170
    %216 = vmatprep.subr.mxu0 0.0
    %217 = vmatpush1.msra.mxu0 %v169
    %218 = vmatprep.subr.mxu0 0.0
    %219 = vmatpush1.msra.mxu0 %v168
    %220 = vmatprep.subr.mxu0 0.0
    %221 = vmatpush1.msra.mxu0 %v167
    %222 = vmatprep.subr.mxu0 0.0
    %223 = vmatpush2.msra.mxu0 0.0
    %224 = vmatprep.subr.mxu0 0.0
    %225 = vmatpush2.msra.mxu0 0.0
    %226 = vmatprep.subr.mxu0 0.0
    %227 = vmatpush2.msra.mxu0 0.0
    %228 = vmatprep.subr.mxu0 0.0
    %229 = vmatpush2.msra.mxu0 0.0
    %230 = vmatprep.subr.mxu0 0.0
    %231 = vmatpush2.msra.mxu0 0.0
    %232 = vmatprep.subr.mxu0 0.0
    %233 = vmatpush2.msra.mxu0 0.0
    %234 = vmatprep.subr.mxu0 0.0
    %235 = vmatpush2.msra.mxu0 0.0
    %236 = vmatprep.subr.mxu0 0.0
    %237 = vmatpush2.msra.mxu0 0.0
    %238 = vmatprep.subr.mxu0 0.0
    %239 = vmatpush2.msra.mxu0 0.0
    %240 = vmatprep.subr.mxu0 0.0
    %241 = vmatpush2.msra.mxu0 0.0
    %242 = vmatprep.subr.mxu0 0.0
    %243 = vmatpush2.msra.mxu0 0.0
    %244 = vmatprep.subr.mxu0 0.0
    %245 = vmatpush2.msra.mxu0 0.0
    %246 = vmatprep.subr.mxu0 0.0
    %247 = vmatpush2.msra.mxu0 0.0
    %248 = vmatprep.subr.mxu0 0.0
    %249 = vmatpush2.msra.mxu0 0.0
    %250 = vmatprep.subr.mxu0 0.0
    %251 = vmatpush2.msra.mxu0 0.0
    %252 = vmatprep.subr.mxu0 0.0
    %253 = vmatpush2.msra.mxu0 0.0
    %254 = vmatprep.mubr.f32.mxu0 0.0
    %255 = vmatmul.mubr.f32.gmra.mxu0 %v166
    %v256 = vpop.f32.mrf.mxu0
    %v257 = vadd.f32 %v188, %v256
    %v258 = vpop.f32.mrf.mxu0
    %259 = vdwg.mxu0
    %v260 = vmax.f32 %v257, 0.0
    %v261 = vld [vmem:[#allocation8] sm:$0xff]
    %v262 = vld [vmem:[#allocation8 + $0x8] sm:$0xff]
    %v263 = vld [vmem:[#allocation8 + $0x10] sm:$0xff]
    %v264 = vld [vmem:[#allocation8 + $0x18] sm:$0xff]
    %v265 = vld [vmem:[#allocation8 + $0x20] sm:$0xff]
    %v266 = vld [vmem:[#allocation8 + $0x28] sm:$0xff]
    %v267 = vld [vmem:[#allocation8 + $0x30] sm:$0xff]
    %v268 = vld [vmem:[#allocation8 + $0x38] sm:$0xff]
    %v269 = vld [vmem:[#allocation8 + $0x40] sm:$0xff]
    %v270 = vld [vmem:[#allocation8 + $0x48] sm:$0xff]
    %v271 = vld [vmem:[#allocation8 + $0x50] sm:$0xff]
    %v272 = vld [vmem:[#allocation8 + $0x58] sm:$0xff]
    %v273 = vld [vmem:[#allocation8 + $0x60] sm:$0xff]
    %v274 = vld [vmem:[#allocation8 + $0x68] sm:$0xff]
    %v275 = vld [vmem:[#allocation8 + $0x70] sm:$0xff]
    %v276 = vld [vmem:[#allocation8 + $0x78] sm:$0xff]
    %v277 = vld [vmem:[%s6] sm:$0x1]
    %v279 = vlaneseq
    %v280 = vshrl.u32 %v279, 7
    %v281 = vsub.s32 0, %v280
    %v282 = vrot.slane %v277, %v281
    %284 = vmatprep.subr.mxu0 0.0
    %285 = vmatpush1.msra.mxu0 %v276
    %286 = vmatprep.subr.mxu0 0.0
    %287 = vmatpush1.msra.mxu0 %v275
    %288 = vmatprep.subr.mxu0 0.0
    %289 = vmatpush1.msra.mxu0 %v274
    %290 = vmatprep.subr.mxu0 0.0
    %291 = vmatpush1.msra.mxu0 %v273
    %292 = vmatprep.subr.mxu0 0.0
    %293 = vmatpush1.msra.mxu0 %v272
    %294 = vmatprep.subr.mxu0 0.0
    %295 = vmatpush1.msra.mxu0 %v271
    %296 = vmatprep.subr.mxu0 0.0
    %297 = vmatpush1.msra.mxu0 %v270
    %298 = vmatprep.subr.mxu0 0.0
    %299 = vmatpush1.msra.mxu0 %v269
    %300 = vmatprep.subr.mxu0 0.0
    %301 = vmatpush1.msra.mxu0 %v268
    %302 = vmatprep.subr.mxu0 0.0
    %303 = vmatpush1.msra.mxu0 %v267
    %304 = vmatprep.subr.mxu0 0.0
    %305 = vmatpush1.msra.mxu0 %v266
    %306 = vmatprep.subr.mxu0 0.0
    %307 = vmatpush1.msra.mxu0 %v265
    %308 = vmatprep.subr.mxu0 0.0
    %309 = vmatpush1.msra.mxu0 %v264
    %310 = vmatprep.subr.mxu0 0.0
    %311 = vmatpush1.msra.mxu0 %v263
    %312 = vmatprep.subr.mxu0 0.0
    %313 = vmatpush1.msra.mxu0 %v262
    %314 = vmatprep.subr.mxu0 0.0
    %315 = vmatpush1.msra.mxu0 %v261
    %316 = vmatprep.subr.mxu0 0.0
    %317 = vmatpush2.msra.mxu0 0.0
    %318 = vmatprep.subr.mxu0 0.0
    %319 = vmatpush2.msra.mxu0 0.0
    %320 = vmatprep.subr.mxu0 0.0
    %321 = vmatpush2.msra.mxu0 0.0
    %322 = vmatprep.subr.mxu0 0.0
    %323 = vmatpush2.msra.mxu0 0.0
    %324 = vmatprep.subr.mxu0 0.0
    %325 = vmatpush2.msra.mxu0 0.0
    %326 = vmatprep.subr.mxu0 0.0
    %327 = vmatpush2.msra.mxu0 0.0
    %328 = vmatprep.subr.mxu0 0.0
    %329 = vmatpush2.msra.mxu0 0.0
    %330 = vmatprep.subr.mxu0 0.0
    %331 = vmatpush2.msra.mxu0 0.0
    %332 = vmatprep.subr.mxu0 0.0
    %333 = vmatpush2.msra.mxu0 0.0
    %334 = vmatprep.subr.mxu0 0.0
    %335 = vmatpush2.msra.mxu0 0.0
    %336 = vmatprep.subr.mxu0 0.0
    %337 = vmatpush2.msra.mxu0 0.0
    %338 = vmatprep.subr.mxu0 0.0
    %339 = vmatpush2.msra.mxu0 0.0
    %340 = vmatprep.subr.mxu0 0.0
    %341 = vmatpush2.msra.mxu0 0.0
    %342 = vmatprep.subr.mxu0 0.0
    %343 = vmatpush2.msra.mxu0 0.0
    %344 = vmatprep.subr.mxu0 0.0
    %345 = vmatpush2.msra.mxu0 0.0
    %346 = vmatprep.subr.mxu0 0.0
    %347 = vmatpush2.msra.mxu0 0.0
    %348 = vmatprep.mubr.f32.mxu0 0.0
    %349 = vmatmul.mubr.f32.gmra.mxu0 %v260
    %v350 = vpop.f32.mrf.mxu0
    %v351 = vadd.f32 %v282, %v350
    %v352 = vpop.f32.mrf.mxu0
    %353 = vdwg.mxu0
    %v354 = vlaneseq
    %v355 = vand.u32 %v354, 127
    %vm356 = vcmp.eq.s32.totalorder %v355, 8
    %v357 = vsel %vm356, %v351, 0.0
    %358 = vadd.xlane.f32.xlu0 %v357
    %v359 = vpop.xlane.xlu0 %358
    %360 = vadd.xlane.f32.xlu0 %v351
    %v361 = vpop.xlane.xlu0 %360
    %v362 = vsub.f32 %v361, %v359
    %v363 = vmul.f32 %v362, 0.125
    %v364 = vsub.f32 %v359, %v363
    %v365 = vadd.f32 %v364, %v351
    %vm366 = vcmask 64512
    %367 = vst.msk [vmem:[#allocation10] sm:$0xff] %vm366, %v365
    // Predicated region
    $region46: #{tpu_custom_call.1} parent=1 // pred_check
      _
    $region47: #{tpu_custom_call.1} parent=1 // pred_check_branch
      %369 = sbr.rel (0) target = $region49
    $region48: #{tpu_custom_call.1} parent=1 // pred_region
      %s371 = ssub.s32 128, 128
      %372 = vsyncadd [#allocation4], %s371
      %s374 = sshll.u32 [#allocation10], 4
      %s375 = int_to_ptr.vmem [resolvable:$true] %s374
      %377 = dma.vmem_to_hbm [thread:$0]  %s375, 128, %s7, [#allocation4]
    $region49: #{tpu_custom_call.1} parent=1 // pred_fallthru
      _
    // Predicated region
    $region50: #{tpu_custom_call.1} parent=1 // pred_check
      _
    $region51: #{tpu_custom_call.1} parent=1 // pred_check_branch
      %379 = sbr.rel (0) target = $region53
    $region52: #{tpu_custom_call.1} parent=1 // pred_region
      %380 = dma.done [#allocation4], 128
    $region53: #{tpu_custom_call.1} parent=1 // pred_fallthru
      _
    %381 = vsyncpa [#allocation3], 1
    %382 = vsyncpa [#allocation6], 1
    %383 = vsyncpa [#allocation9], 1
    %384 = vsyncpa [#allocation4], 1

</llo_original>
